<compile_context>
chip_gen: v6e
topology: v6e:2x2x1
jax: 0.10.0
libtpu: 0.0.40
codegen_flags: <defaults>
</compile_context>

<pallas_src>
import jax
import jax.numpy as jnp
from jax import lax
from jax.experimental import pallas as pl
from jax.experimental.pallas import tpu as pltpu


def _round_up(x, m):
    return ((x + m - 1) // m) * m


def _fused_embed_kernel(idx_ref, table_ref, out_ref):
    """One (row-tile, vocab-tile) grid step.

    idx_ref:   (tile_n, C) int32   vocab-offset indices (global offsets)
    table_ref: (tile_v, E_pad) f32 slice of the block-diagonal slab
    out_ref:   (tile_n, E_pad) f32 resident across the vocab axis (accumulator)
    """
    v = pl.program_id(1)
    tile_v = table_ref.shape[0]
    idx = idx_ref[...]                       # (tile_n, C)
    tile_n, num_cols = idx.shape

    # (1, tile_v) iota only -- broadcast against the (tile_n, 1) index column;
    # avoids materializing a (tile_n, V) iota (vreg-file blowup / spills).
    col = lax.broadcasted_iota(jnp.int32, (1, tile_v), 1) + v * tile_v

    # bf16 counts: values are tiny exact integers, so this is numerically
    # identical to f32 but halves the live footprint of the accumulation loop.
    counts = jnp.zeros((tile_n, tile_v), jnp.bfloat16)
    for c in range(num_cols):                # static, tiny loop over categorical cols
        counts = counts + (idx[:, c:c + 1] == col).astype(jnp.bfloat16)

    @pl.when(v == 0)
    def _():
        out_ref[...] = jnp.zeros_like(out_ref)

    out_ref[...] += jnp.dot(counts, table_ref[...],
                            preferred_element_type=jnp.float32)


def fused_embedding_lookup(idx, table, *, tile_n, tile_v, vmem_limit_bytes=None):
    """idx: (N_pad, C) int32 (already vocab-offset per column),
    table: (V_pad, E_pad) f32 block-diagonal slab -> (N_pad, E_pad) f32."""
    n_rows, n_cols = idx.shape
    v_pad, e_pad = table.shape
    assert n_rows % tile_n == 0 and v_pad % tile_v == 0
    n_tiles = n_rows // tile_n
    v_tiles = v_pad // tile_v

    # Resident slab (single vocab tile): single-buffer it -- its index_map is
    # constant, so double-buffering would only double the VMEM footprint.
    if v_tiles == 1:
        slab_spec = pl.BlockSpec((tile_v, e_pad), lambda i, v: (v, 0),
                                 pipeline_mode=pl.Buffered(1))
        slab_bufs = 1
    else:
        slab_spec = pl.BlockSpec((tile_v, e_pad), lambda i, v: (v, 0))
        slab_bufs = 2

    if vmem_limit_bytes is None:
        need = (slab_bufs * tile_v * e_pad * 4        # slab tile buffer(s)
                + 2 * tile_n * n_cols * 4             # double-buffered idx tiles
                + 2 * tile_n * e_pad * 4              # double-buffered out tiles
                + tile_n * tile_v * 2)                # bf16 one-hot counts
        vmem_limit_bytes = int(min(64 << 20, max(32 << 20, 2 * need)))

    return pl.pallas_call(
        _fused_embed_kernel,
        out_shape=jax.ShapeDtypeStruct((n_rows, e_pad), table.dtype),
        grid_spec=pltpu.PrefetchScalarGridSpec(
            num_scalar_prefetch=0,
            grid=(n_tiles, v_tiles),                  # reduction (vocab) axis last
            in_specs=[
                # index tile: second-to-last dim (tile_n) % 8 == 0, last dim full C
                pl.BlockSpec((tile_n, n_cols), lambda i, v: (i, 0)),
                slab_spec,
            ],
            # lane-dense output (E_pad % 128 == 0 -> unmasked stores); index_map
            # ignores v -> output tile stays resident as the accumulator.
            out_specs=pl.BlockSpec((tile_n, e_pad), lambda i, v: (i, 0)),
        ),
        compiler_params=pltpu.CompilerParams(
            dimension_semantics=("parallel", "arbitrary"),
            vmem_limit_bytes=vmem_limit_bytes),
    )(idx, table)


class CategoricalEmbeddingLayer:
    """JAX/Pallas equivalent of categorical_embedding_layer (MultiEmbedding)."""

    def __init__(self, embedding_sizes, categorical_groups, embedding_paddings,
                 x_categoricals, max_embedding_size, key,
                 tile_n=512, max_tile_v=512):
        self.tile_n = tile_n

        # Per-name tables (dim capped by max_embedding_size; padding_idx=0 for
        # non-grouped padded names -> row 0 zeroed, matching forward semantics).
        # TODO(synk): nn.Embedding's gradient-freezing of the padding row is a
        # training-time behaviour and is not replicated (forward only).
        self.tables = {}
        for name, (card, dim) in embedding_sizes.items():
            if max_embedding_size is not None:
                dim = min(dim, max_embedding_size)
            key, sub = jax.random.split(key)
            w = jax.random.normal(sub, (card, dim), jnp.float32)  # ~ nn.Embedding init
            if name not in categorical_groups and name in embedding_paddings:
                w = w.at[0].set(0.0)
            self.tables[name] = w

        # Which x_cat columns feed each table (1 for a plain Embedding,
        # len(group) for an EmbeddingBag(mode="sum") group).
        self.columns = {}
        for name in embedding_sizes:
            members = categorical_groups.get(name, [name])
            self.columns[name] = [x_categoricals.index(m) for m in members]

        # Pack all tables into one block-diagonal slab, tiled along the vocab dim.
        v_total = sum(t.shape[0] for t in self.tables.values())
        e_total = sum(t.shape[1] for t in self.tables.values())
        self.tile_v = min(max_tile_v, _round_up(v_total, 8))
        v_pad = _round_up(v_total, self.tile_v)
        e_pad = _round_up(e_total, 128)              # lane-dense output slab
        slab = jnp.zeros((v_pad, e_pad), jnp.float32)
        self.v_base = {}
        self.out_slices = {}
        v_off, e_off = 0, 0
        for name, t in self.tables.items():
            v, e = t.shape
            slab = slab.at[v_off:v_off + v, e_off:e_off + e].set(t)
            self.v_base[name] = v_off
            self.out_slices[name] = (e_off, e)
            v_off += v
            e_off += e
        self.slab = slab
        self.e_total = e_total

        # Per-x_cat-column vocab offset into the slab.
        num_cols = len(x_categoricals)
        col_off = [0] * num_cols
        for name, cols in self.columns.items():
            for c in cols:
                col_off[c] = self.v_base[name]
        self.col_offsets = jnp.asarray(col_off, jnp.int32)

    def _lookup(self, x_cat):
        B, T, C = x_cat.shape
        N = B * T
        idx = x_cat.reshape(N, C).astype(jnp.int32) + self.col_offsets[None, :]
        # Row tile: as large as requested but no bigger than the (8-aligned)
        # problem size, so tiny inputs are not padded all the way to tile_n.
        tile_n = min(self.tile_n, _round_up(max(N, 1), 8))
        n_pad = _round_up(max(N, 1), tile_n)
        if n_pad > N:
            pad = jnp.full((n_pad - N, C), -1, jnp.int32)  # -1 -> zero output row
            idx = jnp.concatenate([idx, pad], axis=0)
        out_full = fused_embedding_lookup(idx, self.slab,
                                          tile_n=tile_n, tile_v=self.tile_v)
        return out_full, (B, T, N)

    def __call__(self, x_cat):
        out_full, (B, T, N) = self._lookup(x_cat)
        # NOTE: per-name slices re-read out_full from HBM; consumers that
        # concatenate embeddings anyway should use fused_forward() instead.
        out = {}
        for name, (e_off, e) in self.out_slices.items():
            out[name] = out_full[:N, e_off:e_off + e].reshape(B, T, e)
        return out

    def fused_forward(self, x_cat):
        """(B, T, E_total) concatenation of all embeddings + per-name slice map."""
        out_full, (B, T, N) = self._lookup(x_cat)
        fused = out_full[:N, :self.e_total].reshape(B, T, self.e_total)
        return fused, dict(self.out_slices)

    def reference(self, x_cat):
        """Pure-JAX reference (gather + bag-sum), one table at a time."""
        out = {}
        for name, table in self.tables.items():
            cols = self.columns[name]
            idx = x_cat[..., cols]                                  # (B, T, G)
            out[name] = jnp.take(table, idx, axis=0).sum(axis=-2)   # (B, T, E)
        return out


if __name__ == "__main__":
    # Module configuration (small, synthetic, mirrors MultiEmbedding args).
    embedding_sizes = {
        "weekday": (7, 4),        # cardinality 7, dim 4
        "month": (12, 6),         # cardinality 12, dim 6, padded at idx 0
        "special_days": (5, 8),   # grouped bag over two columns, dim capped to 6
    }
    categorical_groups = {"special_days": ["hol_a", "hol_b"]}
    embedding_paddings = ["month"]
    x_categoricals = ["weekday", "month", "hol_a", "hol_b"]
    max_embedding_size = 6

    layer = CategoricalEmbeddingLayer(
        embedding_sizes, categorical_groups, embedding_paddings,
        x_categoricals, max_embedding_size, key=jax.random.PRNGKey(42))

    # Deterministic input x_cat of shape (B, T, C) with valid indices.
    B, T = 2, 8
    key = jax.random.PRNGKey(0)
    col_cards = []
    for c in x_categoricals:
        for name, (card, _) in embedding_sizes.items():
            members = categorical_groups.get(name, [name])
            if c in members:
                col_cards.append(card)
                break
    cols = []
    for card in col_cards:
        key, sub = jax.random.split(key)
        cols.append(jax.random.randint(sub, (B, T), 0, card, dtype=jnp.int32))
    x_cat = jnp.stack(cols, axis=-1)   # (2, 8, 4)

    out = layer(x_cat)
    out = jax.block_until_ready(out)

    ref = layer.reference(x_cat)
    for name in out:
        assert out[name].shape == ref[name].shape, name
        assert jnp.allclose(out[name], ref[name], atol=1e-5), name

    # Fused (concatenated) output path as well.
    fused, slices = layer.fused_forward(x_cat)
    fused = jax.block_until_ready(fused)
    for name, (e_off, e) in slices.items():
        assert jnp.allclose(fused[..., e_off:e_off + e], ref[name], atol=1e-5), name

    print("KERNEL_OK")
</pallas_src>

<mosaic_0001>
module attributes {stable_mosaic.version = 11 : i64} {
  func.func @_fused_embed_kernel(%arg0: i32, %arg1: i32, %arg2: memref<16x4xi32, #tpu.memory_space<vmem>>, %arg3: memref<24x128xf32, #tpu.memory_space<vmem>>, %arg4: memref<16x128xf32, #tpu.memory_space<vmem>>) attributes {dimension_semantics = [#tpu.dimension_semantics<parallel>, #tpu.dimension_semantics<arbitrary>], iteration_bounds = array<i64: 1, 1>, scalar_prefetch = 0 : i64, scratch_operands = 0 : i64, tpu.core_type = #tpu.core_type<tc>, window_params = [{transform_indices = @transform_0, window_bounds = array<i64: 16, 4>}, {pipeline_mode = #tpu.pipeline_mode<synchronous>, transform_indices = @transform_1, window_bounds = array<i64: 24, 128>}, {transform_indices = @transform_2, window_bounds = array<i64: 16, 128>}]} {
    %c0 = arith.constant 0 : index
    %c0_0 = arith.constant 0 : index
    %0 = vector.load %arg2[%c0, %c0_0] : memref<16x4xi32, #tpu.memory_space<vmem>>, vector<16x4xi32>
    %1 = tpu.iota {dimensions = array<i32: 1>} : vector<1x24xi32>
    %c24_i32 = arith.constant 24 : i32
    %2 = arith.muli %arg1, %c24_i32 : i32
    %3 = vector.broadcast %2 : i32 to vector<1x24xi32>
    %4 = arith.addi %1, %3 : vector<1x24xi32>
    %cst = arith.constant 0.000000e+00 : bf16
    %5 = vector.broadcast %cst : bf16 to vector<16x24xbf16>
    %6 = vector.extract_strided_slice %0 {offsets = [0, 0], sizes = [16, 1], strides = [1, 1]} : vector<16x4xi32> to vector<16x1xi32>
    %7 = vector.broadcast %6 : vector<16x1xi32> to vector<16x24xi32>
    %8 = vector.broadcast %4 : vector<1x24xi32> to vector<16x24xi32>
    %9 = arith.cmpi eq, %7, %8 : vector<16x24xi32>
    %10 = arith.extui %9 : vector<16x24xi1> to vector<16x24xi32>
    %11 = arith.sitofp %10 : vector<16x24xi32> to vector<16x24xf32>
    %12 = arith.truncf %11 : vector<16x24xf32> to vector<16x24xbf16>
    %13 = arith.addf %5, %12 : vector<16x24xbf16>
    %14 = vector.extract_strided_slice %0 {offsets = [0, 1], sizes = [16, 1], strides = [1, 1]} : vector<16x4xi32> to vector<16x1xi32>
    %15 = vector.broadcast %14 : vector<16x1xi32> to vector<16x24xi32>
    %16 = vector.broadcast %4 : vector<1x24xi32> to vector<16x24xi32>
    %17 = arith.cmpi eq, %15, %16 : vector<16x24xi32>
    %18 = arith.extui %17 : vector<16x24xi1> to vector<16x24xi32>
    %19 = arith.sitofp %18 : vector<16x24xi32> to vector<16x24xf32>
    %20 = arith.truncf %19 : vector<16x24xf32> to vector<16x24xbf16>
    %21 = arith.addf %13, %20 : vector<16x24xbf16>
    %22 = vector.extract_strided_slice %0 {offsets = [0, 2], sizes = [16, 1], strides = [1, 1]} : vector<16x4xi32> to vector<16x1xi32>
    %23 = vector.broadcast %22 : vector<16x1xi32> to vector<16x24xi32>
    %24 = vector.broadcast %4 : vector<1x24xi32> to vector<16x24xi32>
    %25 = arith.cmpi eq, %23, %24 : vector<16x24xi32>
    %26 = arith.extui %25 : vector<16x24xi1> to vector<16x24xi32>
    %27 = arith.sitofp %26 : vector<16x24xi32> to vector<16x24xf32>
    %28 = arith.truncf %27 : vector<16x24xf32> to vector<16x24xbf16>
    %29 = arith.addf %21, %28 : vector<16x24xbf16>
    %30 = vector.extract_strided_slice %0 {offsets = [0, 3], sizes = [16, 1], strides = [1, 1]} : vector<16x4xi32> to vector<16x1xi32>
    %31 = vector.broadcast %30 : vector<16x1xi32> to vector<16x24xi32>
    %32 = vector.broadcast %4 : vector<1x24xi32> to vector<16x24xi32>
    %33 = arith.cmpi eq, %31, %32 : vector<16x24xi32>
    %34 = arith.extui %33 : vector<16x24xi1> to vector<16x24xi32>
    %35 = arith.sitofp %34 : vector<16x24xi32> to vector<16x24xf32>
    %36 = arith.truncf %35 : vector<16x24xf32> to vector<16x24xbf16>
    %37 = arith.addf %29, %36 : vector<16x24xbf16>
    %c0_i32 = arith.constant 0 : i32
    %38 = arith.cmpi eq, %arg1, %c0_i32 : i32
    %39 = arith.extui %38 : i1 to i32
    %c0_i32_1 = arith.constant 0 : i32
    %40 = arith.cmpi ne, %39, %c0_i32_1 : i32
    scf.if %40 {
      %cst_9 = arith.constant 0.000000e+00 : f32
      %46 = vector.broadcast %cst_9 : f32 to vector<16x128xf32>
      %c0_10 = arith.constant 0 : index
      %c0_11 = arith.constant 0 : index
      %47 = vector.load %arg4[%c0_10, %c0_11] : memref<16x128xf32, #tpu.memory_space<vmem>>, vector<16x128xf32>
      tpu.vector_store %arg4[%c0_10, %c0_11], %46 {strides = array<i32>} : memref<16x128xf32, #tpu.memory_space<vmem>>, vector<16x128xf32>,
    } else {
    }
    %c0_2 = arith.constant 0 : index
    %c0_3 = arith.constant 0 : index
    %41 = vector.load %arg4[%c0_2, %c0_3] : memref<16x128xf32, #tpu.memory_space<vmem>>, vector<16x128xf32>
    %c0_4 = arith.constant 0 : index
    %c0_5 = arith.constant 0 : index
    %42 = vector.load %arg3[%c0_4, %c0_5] : memref<24x128xf32, #tpu.memory_space<vmem>>, vector<24x128xf32>
    %cst_6 = arith.constant dense<0.000000e+00> : vector<16x128xf32>
    %43 = tpu.matmul %37, %42, %cst_6 {dimension_numbers = #tpu.dot_dimension_numbers<[1], [0], [0], [1], [0, 0, 1, 1], [], []>} : vector<16x24xbf16>, vector<24x128xf32>, vector<16x128xf32> -> vector<16x128xf32>
    %44 = arith.addf %41, %43 : vector<16x128xf32>
    %c0_7 = arith.constant 0 : index
    %c0_8 = arith.constant 0 : index
    %45 = vector.load %arg4[%c0_7, %c0_8] : memref<16x128xf32, #tpu.memory_space<vmem>>, vector<16x128xf32>
    tpu.vector_store %arg4[%c0_7, %c0_8], %44 {strides = array<i32>} : memref<16x128xf32, #tpu.memory_space<vmem>>, vector<16x128xf32>,
    return
  }
  func.func @transform_0(%arg0: i32, %arg1: i32) -> (i32, i32) {
    %c0_i32 = arith.constant 0 : i32
    %c0_i32_0 = arith.constant 0 : i32
    return %arg0, %c0_i32 : i32, i32
  }
  func.func @transform_1(%arg0: i32, %arg1: i32) -> (i32, i32) {
    %c0_i32 = arith.constant 0 : i32
    %c0_i32_0 = arith.constant 0 : i32
    return %arg1, %c0_i32 : i32, i32
  }
  func.func @transform_2(%arg0: i32, %arg1: i32) -> (i32, i32) {
    %c0_i32 = arith.constant 0 : i32
    %c0_i32_0 = arith.constant 0 : i32
    return %arg0, %c0_i32 : i32, i32
  }
}

</mosaic_0001>

<llo_original>
// kernel: tpu_custom_call.1
$region0: #{tpu_custom_call.1}
  #allocation0 [shape = 'u32[]', space=smem, size = 0x4, offset = 0x4, fixed_abs, tag = 'smem constant byte address 0x4 - core index']
  #allocation1 [shape = 'u32[144,128]{1,0:T(1,128)}', space=vmem, size = 0x12000, scoped, tag = 'internal scratch']
  %s0 = inlined_call_operand.vmem [shape: s32[16,4], index: 0, kind: input, shape index: {}]
  %s1 = inlined_call_operand.hbm [shape: f32[24,128], index: 1, kind: input, shape index: {}]
  %s2 = inlined_call_operand.hbm [shape: f32[16,128], index: 2, kind: output, shape index: {}]
  %s3 = sld [smem:[#allocation0]]
  $region26: #{tpu_custom_call.1} parent=0
    _
  %s5 = ssub.s32 1, %s3
  %s6 = scalar_select 0, %s5, %s3
  $region1: #{tpu_custom_call.1} parent=0
    #allocation2 [shape = 'u8[12288]{0}', space=vmem, size = 0x3000, scoped, tag = 'input window, operand 1, single buffered']
    #allocation3 [shape = 's32[1]{0}', space=sflag, size = 0x4, scoped, tag = 'scoped memory for tpu_custom_call.1']
    #allocation4 [shape = 's32[1]{0}', space=sflag, size = 0x4, scoped, tag = 'scoped memory for tpu_custom_call.1']
    #allocation5 [shape = 'u8[8192]{0}', space=vmem, size = 0x2000, scoped, tag = 'output window, operand 0, single buffered']
    %7 = vsyncpa [#allocation3], 0
    %8 = vsyncpa [#allocation4], 0
    // Predicated region
    $region2: #{tpu_custom_call.1} parent=1 // pred_check
      _
    $region3: #{tpu_custom_call.1} parent=1 // pred_check_branch
      %10 = sbr.rel (0) target = $region5
    $region4: #{tpu_custom_call.1} parent=1 // pred_region
      _
    $region5: #{tpu_custom_call.1} parent=1 // pred_fallthru
      _
    // Predicated region
    $region6: #{tpu_custom_call.1} parent=1 // pred_check
      _
    $region7: #{tpu_custom_call.1} parent=1 // pred_check_branch
      %12 = sbr.rel (0) target = $region9
    $region8: #{tpu_custom_call.1} parent=1 // pred_region
      %s14 = ssub.s32 384, 384
      %15 = vsyncadd [#allocation3], %s14
      %s16 = sshll.u32 [#allocation2], 4
      %s17 = int_to_ptr.vmem [resolvable:$true] %s16
      %22 = dma.hbm_to_vmem [thread:$0]  %s1, 384, %s17, [#allocation3], 128, 128, 8
    $region9: #{tpu_custom_call.1} parent=1 // pred_fallthru
      _
    // Predicated region
    $region10: #{tpu_custom_call.1} parent=1 // pred_check
      _
    $region11: #{tpu_custom_call.1} parent=1 // pred_check_branch
      %24 = sbr.rel (0) target = $region13
    $region12: #{tpu_custom_call.1} parent=1 // pred_region
      %25 = dma.done [#allocation3], 384
    $region13: #{tpu_custom_call.1} parent=1 // pred_fallthru
      _
    %v27 = vld [vmem:[%s0] sm:$0xff]
    %v28 = vld [vmem:[%s0 + $0x8] sm:$0xff]
    %v29 = vlaneseq
    %v30 = vand.u32 %v29, 127
    %s31 = smul.u32 0, 24
    %v32 = vstv %s31
    %v33 = vadd.s32 %v30, %v32
    %34 = vset.pattern.permute.xlu0 0
    %35 = vperm.xlu0 %34, %v27
    %v36 = vpop.permute.xlu0 %35
    %37 = vset.pattern.permute.xlu0 0
    %38 = vperm.xlu0 %37, %v28
    %v39 = vpop.permute.xlu0 %38
    %vm40 = vcmp.eq.s32.totalorder %v36, %v33
    %vm41 = vcmp.eq.s32.totalorder %v39, %v33
    %v42 = vsel %vm40, 1, 0
    %v43 = vsel %vm41, 1, 0
    %v44 = vcvt.s32.f32 %v42
    %v45 = vcvt.s32.f32 %v43
    %v46 = vpack.c.bf16 %v45, %v44
    %v47 = vadd.bf16 %v46, 0
    %48 = vset.pattern.permute.xlu0 1
    %49 = vperm.xlu0 %48, %v27
    %v50 = vpop.permute.xlu0 %49
    %51 = vset.pattern.permute.xlu0 1
    %52 = vperm.xlu0 %51, %v28
    %v53 = vpop.permute.xlu0 %52
    %vm54 = vcmp.eq.s32.totalorder %v50, %v33
    %vm55 = vcmp.eq.s32.totalorder %v53, %v33
    %v56 = vsel %vm54, 1, 0
    %v57 = vsel %vm55, 1, 0
    %v58 = vcvt.s32.f32 %v56
    %v59 = vcvt.s32.f32 %v57
    %v60 = vpack.c.bf16 %v59, %v58
    %v61 = vadd.bf16 %v47, %v60
    %62 = vset.pattern.permute.xlu0 2
    %63 = vperm.xlu0 %62, %v27
    %v64 = vpop.permute.xlu0 %63
    %65 = vset.pattern.permute.xlu0 2
    %66 = vperm.xlu0 %65, %v28
    %v67 = vpop.permute.xlu0 %66
    %vm68 = vcmp.eq.s32.totalorder %v64, %v33
    %vm69 = vcmp.eq.s32.totalorder %v67, %v33
    %v70 = vsel %vm68, 1, 0
    %v71 = vsel %vm69, 1, 0
    %v72 = vcvt.s32.f32 %v70
    %v73 = vcvt.s32.f32 %v71
    %v74 = vpack.c.bf16 %v73, %v72
    %v75 = vadd.bf16 %v61, %v74
    %76 = vset.pattern.permute.xlu0 3
    %77 = vperm.xlu0 %76, %v27
    %v78 = vpop.permute.xlu0 %77
    %79 = vset.pattern.permute.xlu0 3
    %80 = vperm.xlu0 %79, %v28
    %v81 = vpop.permute.xlu0 %80
    %vm82 = vcmp.eq.s32.totalorder %v78, %v33
    %vm83 = vcmp.eq.s32.totalorder %v81, %v33
    %v84 = vsel %vm82, 1, 0
    %v85 = vsel %vm83, 1, 0
    %v86 = vcvt.s32.f32 %v84
    %v87 = vcvt.s32.f32 %v85
    %v88 = vpack.c.bf16 %v87, %v86
    %v89 = vadd.bf16 %v75, %v88
    %p90 = scmp.eq.s32.totalorder 0, 0
    // Predicated region
    $region14: #{tpu_custom_call.1} parent=1 // pred_check
      %p91 = pneg %p90
    $region15: #{tpu_custom_call.1} parent=1 // pred_check_branch
      %93 = sbr.rel (%p91) target = $region17
    $region16: #{tpu_custom_call.1} parent=1 // pred_region
      %94 = vst [vmem:[#allocation5] sm:$0xff] 0.0
      %95 = vst [vmem:[#allocation5 + $0x8] sm:$0xff] 0.0
    $region17: #{tpu_custom_call.1} parent=1 // pred_fallthru
      _
    %v96 = vld [vmem:[#allocation5] sm:$0xff]
    %v97 = vld [vmem:[#allocation5 + $0x8] sm:$0xff]
    %v98 = vld [vmem:[#allocation2] sm:$0xff]
    %v99 = vld [vmem:[#allocation2 + $0x8] sm:$0xff]
    %v100 = vld [vmem:[#allocation2 + $0x10] sm:$0xff]
    %vm101 = vcmask 195584
    %v103 = vsel %vm101, %v89, 0
    %105 = vmatprep.subr.mxu0 0.0
    %106 = vmatpush1.msra.mxu0 0.0
    %107 = vmatprep.subr.mxu0 0.0
    %108 = vmatpush1.msra.mxu0 0.0
    %109 = vmatprep.subr.mxu0 0.0
    %110 = vmatpush1.msra.mxu0 0.0
    %111 = vmatprep.subr.mxu0 0.0
    %112 = vmatpush1.msra.mxu0 0.0
    %113 = vmatprep.subr.mxu0 0.0
    %114 = vmatpush1.msra.mxu0 0.0
    %115 = vmatprep.subr.mxu0 0.0
    %116 = vmatpush1.msra.mxu0 0.0
    %117 = vmatprep.subr.mxu0 0.0
    %118 = vmatpush1.msra.mxu0 0.0
    %119 = vmatprep.subr.mxu0 0.0
    %120 = vmatpush1.msra.mxu0 0.0
    %121 = vmatprep.subr.mxu0 0.0
    %122 = vmatpush1.msra.mxu0 0.0
    %123 = vmatprep.subr.mxu0 0.0
    %124 = vmatpush1.msra.mxu0 0.0
    %125 = vmatprep.subr.mxu0 0.0
    %126 = vmatpush1.msra.mxu0 0.0
    %127 = vmatprep.subr.mxu0 0.0
    %128 = vmatpush1.msra.mxu0 0.0
    %129 = vmatprep.subr.mxu0 0.0
    %130 = vmatpush1.msra.mxu0 0.0
    %131 = vmatprep.subr.mxu0 0.0
    %132 = vmatpush1.msra.mxu0 %v100
    %133 = vmatprep.subr.mxu0 0.0
    %134 = vmatpush1.msra.mxu0 %v99
    %135 = vmatprep.subr.mxu0 0.0
    %136 = vmatpush1.msra.mxu0 %v98
    %137 = vmatprep.subr.mxu0 0.0
    %138 = vmatpush2.msra.mxu0 0.0
    %139 = vmatprep.subr.mxu0 0.0
    %140 = vmatpush2.msra.mxu0 0.0
    %141 = vmatprep.subr.mxu0 0.0
    %142 = vmatpush2.msra.mxu0 0.0
    %143 = vmatprep.subr.mxu0 0.0
    %144 = vmatpush2.msra.mxu0 0.0
    %145 = vmatprep.subr.mxu0 0.0
    %146 = vmatpush2.msra.mxu0 0.0
    %147 = vmatprep.subr.mxu0 0.0
    %148 = vmatpush2.msra.mxu0 0.0
    %149 = vmatprep.subr.mxu0 0.0
    %150 = vmatpush2.msra.mxu0 0.0
    %151 = vmatprep.subr.mxu0 0.0
    %152 = vmatpush2.msra.mxu0 0.0
    %153 = vmatprep.subr.mxu0 0.0
    %154 = vmatpush2.msra.mxu0 0.0
    %155 = vmatprep.subr.mxu0 0.0
    %156 = vmatpush2.msra.mxu0 0.0
    %157 = vmatprep.subr.mxu0 0.0
    %158 = vmatpush2.msra.mxu0 0.0
    %159 = vmatprep.subr.mxu0 0.0
    %160 = vmatpush2.msra.mxu0 0.0
    %161 = vmatprep.subr.mxu0 0.0
    %162 = vmatpush2.msra.mxu0 0.0
    %163 = vmatprep.subr.mxu0 0.0
    %164 = vmatpush2.msra.mxu0 0.0
    %165 = vmatprep.subr.mxu0 0.0
    %166 = vmatpush2.msra.mxu0 0.0
    %167 = vmatprep.subr.mxu0 0.0
    %168 = vmatpush2.msra.mxu0 0.0
    %169 = vmatprep.mubr.bf16.mxu0 0
    %170 = vmatmul.mubr.bf16.gmra.mxu0 %v103
    %v171 = vpop.f32.mrf.mxu0
    %v172 = vadd.f32 0.0, %v171
    %v173 = vpop.f32.mrf.mxu0
    %v174 = vpop.f32.mrf.mxu0
    %v175 = vadd.f32 0.0, %v174
    %v176 = vpop.f32.mrf.mxu0
    %177 = vdwg.mxu0
    %v178 = vadd.f32 %v96, %v172
    %v179 = vadd.f32 %v97, %v175
    %180 = vst [vmem:[#allocation5] sm:$0xff] %v178
    %181 = vst [vmem:[#allocation5 + $0x8] sm:$0xff] %v179
    // Predicated region
    $region18: #{tpu_custom_call.1} parent=1 // pred_check
      _
    $region19: #{tpu_custom_call.1} parent=1 // pred_check_branch
      %183 = sbr.rel (0) target = $region21
    $region20: #{tpu_custom_call.1} parent=1 // pred_region
      %s185 = ssub.s32 256, 256
      %186 = vsyncadd [#allocation4], %s185
      %s187 = sshll.u32 [#allocation5], 4
      %s188 = int_to_ptr.vmem [resolvable:$true] %s187
      %193 = dma.vmem_to_hbm [thread:$0]  %s188, 256, %s2, [#allocation4], 128, 128, 8
    $region21: #{tpu_custom_call.1} parent=1 // pred_fallthru
      _
    // Predicated region
    $region22: #{tpu_custom_call.1} parent=1 // pred_check
      _
    $region23: #{tpu_custom_call.1} parent=1 // pred_check_branch
      %195 = sbr.rel (0) target = $region25
    $region24: #{tpu_custom_call.1} parent=1 // pred_region
      %196 = dma.done [#allocation4], 256
    $region25: #{tpu_custom_call.1} parent=1 // pred_fallthru
      _
    %197 = vsyncpa [#allocation3], 1
    %198 = vsyncpa [#allocation4], 1

</llo_original>
